<compile_context>
chip_gen: v6e
topology: v6e:2x2x1
jax: 0.10.0
libtpu: 0.0.40
codegen_flags: <defaults>
</compile_context>

<pallas_src>
import jax
import jax.numpy as jnp
from jax import lax
from jax.experimental import pallas as pl
from jax.experimental.pallas import tpu as pltpu


def _round_up(x: int, m: int) -> int:
    return (x + m - 1) // m * m


def _choose_row_tile(H, W, B, C, n_pred, budget_bytes=4 * 1024 * 1024) -> int:
    """Largest 8-multiple H-tile whose per-step input footprint is ~budget."""
    wp = _round_up(W, 128)                   # lane-padded VMEM width
    rows_per_h = B * (n_pred * C + C + 1)    # pred + gt + valid sublane rows
    bytes_per_h = rows_per_h * wp * 4        # f32
    th = (budget_bytes // bytes_per_h) // 8 * 8
    th = max(8, th)
    th = min(th, _round_up(H, 8))
    return int(th)


def sequence_loss_pallas(flow_preds, flow_gt, valid, *, gamma: float, max_flow: float):
    """flow_preds: list of N arrays [B,2,H,W]; flow_gt: [B,2,H,W]; valid: [B,1,H,W]."""
    n_pred = len(flow_preds)
    B, C, H, W = flow_gt.shape

    tH = _choose_row_tile(H, W, B, C, n_pred)
    num_tiles = -(-H // tH)                  # cdiv
    ragged = (H % tH) != 0

    # gamma**(N-1-i) as compile-time immediates.
    weights = [float(gamma ** (n_pred - 1 - n)) for n in range(n_pred)]
    max_flow_f = float(max_flow)

    def kernel(*refs):
        pred_refs = refs[:n_pred]
        gt_ref = refs[n_pred]
        valid_ref = refs[n_pred + 1]
        out_ref = refs[n_pred + 2]

        gtf = gt_ref[...].astype(jnp.float32)                          # (B,C,tH,W)

        # Loop-invariant validity mask: computed once per tile, reused for all
        # predictions.  sqrt matches the PyTorch semantics exactly (EUP slot).
        mag = jnp.sqrt(jnp.sum(gtf * gtf, axis=1, keepdims=True))      # (B,1,tH,W)
        mask = jnp.logical_and(
            valid_ref[...].astype(jnp.float32) >= 0.5,
            mag < max_flow_f,
        )                                                               # (B,1,tH,W)
        if ragged:
            row = lax.broadcasted_iota(jnp.int32, (1, 1, tH, W), 2)
            row = row + pl.program_id(0) * tH
            mask = jnp.logical_and(mask, row < H)

        # Unrolled weighted sum over the N predictions; weights are immediates.
        acc = weights[0] * jnp.abs(pred_refs[0][...].astype(jnp.float32) - gtf)
        for n in range(1, n_pred):
            acc = acc + weights[n] * jnp.abs(
                pred_refs[n][...].astype(jnp.float32) - gtf)

        # Select (not multiply) so undefined tail-row reads can never leak.
        masked = jnp.where(mask, acc, 0.0)                              # (B,C,tH,W)

        # Leading-axis reductions are pure VPU elementwise adds (no XLU).
        r = jnp.sum(masked, axis=(0, 1))                                # (tH, W)
        folded = r[0:8, :]
        for j in range(1, tH // 8):                                     # static slices
            folded = folded + r[j * 8:(j + 1) * 8, :]
        out_ref[...] = folded                                           # (8, W)

    spec4 = pl.BlockSpec((B, C, tH, W), lambda i: (0, 0, i, 0))
    in_specs = [spec4 for _ in range(n_pred)]               # N predictions (no stack)
    in_specs.append(spec4)                                  # gt
    in_specs.append(pl.BlockSpec((B, 1, tH, W), lambda i: (0, 0, i, 0)))  # valid

    partial = pl.pallas_call(
        kernel,
        out_shape=jax.ShapeDtypeStruct((num_tiles * 8, W), jnp.float32),
        grid_spec=pltpu.PrefetchScalarGridSpec(
            num_scalar_prefetch=0,
            grid=(num_tiles,),
            in_specs=in_specs,
            out_specs=pl.BlockSpec((8, W), lambda i: (i, 0)),
        ),
        compiler_params=pltpu.CompilerParams(
            dimension_semantics=("parallel",),
        ),
    )(*flow_preds, flow_gt, valid)

    # Single cross-tile reduction + the .mean() denominator, applied once.
    inv_count = 1.0 / float(B * C * H * W)
    return jnp.sum(partial) * inv_count


def sequence_loss_ref(flow_preds, flow_gt, valid, *, gamma, max_flow):
    """Pure-JAX reference mirroring the PyTorch forward exactly."""
    n = len(flow_preds)
    mag = jnp.sqrt(jnp.sum(flow_gt ** 2, axis=1, keepdims=True))
    v = jnp.logical_and(valid >= 0.5, mag < max_flow).astype(jnp.float32)
    loss = 0.0
    for i in range(n):
        w = gamma ** (n - i - 1)
        i_loss = jnp.abs(flow_preds[i] - flow_gt)
        loss += w * jnp.mean(v * i_loss)
    return loss


if __name__ == "__main__":
    GAMMA = 0.8
    MAX_FLOW = 400.0

    B, H, W = 2, 16, 16
    N_PRED = 6

    key = jax.random.PRNGKey(0)
    k_gt, k_val, k_pred = jax.random.split(key, 3)

    # inputs['flows'] has shape [B, 1, 2, H, W]; forward takes [:, 0]
    flows = jax.random.normal(k_gt, (B, 1, 2, H, W), jnp.float32) * 5.0
    # inputs['valids'] has shape [B, 1, 1, H, W]; forward takes [:, 0]
    valids = jax.random.uniform(k_val, (B, 1, 1, H, W), jnp.float32)

    flow_gt = flows[:, 0]      # [B,2,H,W]
    valid = valids[:, 0]       # [B,1,H,W]

    pred_keys = jax.random.split(k_pred, N_PRED)
    flow_preds = [
        flow_gt + 0.5 * jax.random.normal(pred_keys[i], (B, 2, H, W), jnp.float32)
        for i in range(N_PRED)
    ]

    loss = sequence_loss_pallas(flow_preds, flow_gt, valid,
                                gamma=GAMMA, max_flow=MAX_FLOW)
    loss = jax.block_until_ready(loss)

    loss_ref = sequence_loss_ref(flow_preds, flow_gt, valid,
                                 gamma=GAMMA, max_flow=MAX_FLOW)
    assert jnp.allclose(loss, loss_ref, rtol=1e-5, atol=1e-6), (loss, loss_ref)

    print("KERNEL_OK")
</pallas_src>

<mosaic_0001>
module attributes {stable_mosaic.version = 11 : i64} {
  func.func @kernel(%arg0: i32, %arg1: memref<2x2x16x16xf32, #tpu.memory_space<vmem>>, %arg2: memref<2x2x16x16xf32, #tpu.memory_space<vmem>>, %arg3: memref<2x2x16x16xf32, #tpu.memory_space<vmem>>, %arg4: memref<2x2x16x16xf32, #tpu.memory_space<vmem>>, %arg5: memref<2x2x16x16xf32, #tpu.memory_space<vmem>>, %arg6: memref<2x2x16x16xf32, #tpu.memory_space<vmem>>, %arg7: memref<2x2x16x16xf32, #tpu.memory_space<vmem>>, %arg8: memref<2x1x16x16xf32, #tpu.memory_space<vmem>>, %arg9: memref<8x16xf32, #tpu.memory_space<vmem>>) attributes {dimension_semantics = [#tpu.dimension_semantics<parallel>], iteration_bounds = array<i64: 1>, scalar_prefetch = 0 : i64, scratch_operands = 0 : i64, tpu.core_type = #tpu.core_type<tc>, window_params = [{transform_indices = @transform_0, window_bounds = array<i64: 2, 2, 16, 16>}, {transform_indices = @transform_1, window_bounds = array<i64: 2, 2, 16, 16>}, {transform_indices = @transform_2, window_bounds = array<i64: 2, 2, 16, 16>}, {transform_indices = @transform_3, window_bounds = array<i64: 2, 2, 16, 16>}, {transform_indices = @transform_4, window_bounds = array<i64: 2, 2, 16, 16>}, {transform_indices = @transform_5, window_bounds = array<i64: 2, 2, 16, 16>}, {transform_indices = @transform_6, window_bounds = array<i64: 2, 2, 16, 16>}, {transform_indices = @transform_7, window_bounds = array<i64: 2, 1, 16, 16>}, {transform_indices = @transform_8, window_bounds = array<i64: 8, 16>}]} {
    %c0 = arith.constant 0 : index
    %c0_0 = arith.constant 0 : index
    %c0_1 = arith.constant 0 : index
    %c0_2 = arith.constant 0 : index
    %0 = vector.load %arg7[%c0, %c0_0, %c0_1, %c0_2] : memref<2x2x16x16xf32, #tpu.memory_space<vmem>>, vector<2x2x16x16xf32>
    %1 = arith.mulf %0, %0 : vector<2x2x16x16xf32>
    %cst = arith.constant dense<0.000000e+00> : vector<2x16x16xf32>
    %2 = vector.multi_reduction <add>, %1, %cst [1] : vector<2x2x16x16xf32> to vector<2x16x16xf32>
    %3 = vector.shape_cast %2 : vector<2x16x16xf32> to vector<2x1x16x16xf32>
    %4 = math.sqrt %3 : vector<2x1x16x16xf32>
    %c0_3 = arith.constant 0 : index
    %c0_4 = arith.constant 0 : index
    %c0_5 = arith.constant 0 : index
    %c0_6 = arith.constant 0 : index
    %5 = vector.load %arg8[%c0_3, %c0_4, %c0_5, %c0_6] : memref<2x1x16x16xf32, #tpu.memory_space<vmem>>, vector<2x1x16x16xf32>
    %cst_7 = arith.constant 5.000000e-01 : f32
    %6 = vector.broadcast %cst_7 : f32 to vector<2x1x16x16xf32>
    %7 = arith.cmpf oge, %5, %6 : vector<2x1x16x16xf32>
    %cst_8 = arith.constant 4.000000e+02 : f32
    %8 = vector.broadcast %cst_8 : f32 to vector<2x1x16x16xf32>
    %9 = arith.cmpf olt, %4, %8 : vector<2x1x16x16xf32>
    %10 = arith.andi %7, %9 : vector<2x1x16x16xi1>
    %c0_9 = arith.constant 0 : index
    %c0_10 = arith.constant 0 : index
    %c0_11 = arith.constant 0 : index
    %c0_12 = arith.constant 0 : index
    %11 = vector.load %arg1[%c0_9, %c0_10, %c0_11, %c0_12] : memref<2x2x16x16xf32, #tpu.memory_space<vmem>>, vector<2x2x16x16xf32>
    %12 = arith.subf %11, %0 : vector<2x2x16x16xf32>
    %13 = math.absf %12 : vector<2x2x16x16xf32>
    %cst_13 = arith.constant 3.276800e-01 : f32
    %14 = vector.broadcast %cst_13 : f32 to vector<2x2x16x16xf32>
    %15 = arith.mulf %14, %13 : vector<2x2x16x16xf32>
    %c0_14 = arith.constant 0 : index
    %c0_15 = arith.constant 0 : index
    %c0_16 = arith.constant 0 : index
    %c0_17 = arith.constant 0 : index
    %16 = vector.load %arg2[%c0_14, %c0_15, %c0_16, %c0_17] : memref<2x2x16x16xf32, #tpu.memory_space<vmem>>, vector<2x2x16x16xf32>
    %17 = arith.subf %16, %0 : vector<2x2x16x16xf32>
    %18 = math.absf %17 : vector<2x2x16x16xf32>
    %cst_18 = arith.constant 4.096000e-01 : f32
    %19 = vector.broadcast %cst_18 : f32 to vector<2x2x16x16xf32>
    %20 = arith.mulf %19, %18 : vector<2x2x16x16xf32>
    %21 = arith.addf %15, %20 : vector<2x2x16x16xf32>
    %c0_19 = arith.constant 0 : index
    %c0_20 = arith.constant 0 : index
    %c0_21 = arith.constant 0 : index
    %c0_22 = arith.constant 0 : index
    %22 = vector.load %arg3[%c0_19, %c0_20, %c0_21, %c0_22] : memref<2x2x16x16xf32, #tpu.memory_space<vmem>>, vector<2x2x16x16xf32>
    %23 = arith.subf %22, %0 : vector<2x2x16x16xf32>
    %24 = math.absf %23 : vector<2x2x16x16xf32>
    %cst_23 = arith.constant 5.120000e-01 : f32
    %25 = vector.broadcast %cst_23 : f32 to vector<2x2x16x16xf32>
    %26 = arith.mulf %25, %24 : vector<2x2x16x16xf32>
    %27 = arith.addf %21, %26 : vector<2x2x16x16xf32>
    %c0_24 = arith.constant 0 : index
    %c0_25 = arith.constant 0 : index
    %c0_26 = arith.constant 0 : index
    %c0_27 = arith.constant 0 : index
    %28 = vector.load %arg4[%c0_24, %c0_25, %c0_26, %c0_27] : memref<2x2x16x16xf32, #tpu.memory_space<vmem>>, vector<2x2x16x16xf32>
    %29 = arith.subf %28, %0 : vector<2x2x16x16xf32>
    %30 = math.absf %29 : vector<2x2x16x16xf32>
    %cst_28 = arith.constant 6.400000e-01 : f32
    %31 = vector.broadcast %cst_28 : f32 to vector<2x2x16x16xf32>
    %32 = arith.mulf %31, %30 : vector<2x2x16x16xf32>
    %33 = arith.addf %27, %32 : vector<2x2x16x16xf32>
    %c0_29 = arith.constant 0 : index
    %c0_30 = arith.constant 0 : index
    %c0_31 = arith.constant 0 : index
    %c0_32 = arith.constant 0 : index
    %34 = vector.load %arg5[%c0_29, %c0_30, %c0_31, %c0_32] : memref<2x2x16x16xf32, #tpu.memory_space<vmem>>, vector<2x2x16x16xf32>
    %35 = arith.subf %34, %0 : vector<2x2x16x16xf32>
    %36 = math.absf %35 : vector<2x2x16x16xf32>
    %cst_33 = arith.constant 8.000000e-01 : f32
    %37 = vector.broadcast %cst_33 : f32 to vector<2x2x16x16xf32>
    %38 = arith.mulf %37, %36 : vector<2x2x16x16xf32>
    %39 = arith.addf %33, %38 : vector<2x2x16x16xf32>
    %c0_34 = arith.constant 0 : index
    %c0_35 = arith.constant 0 : index
    %c0_36 = arith.constant 0 : index
    %c0_37 = arith.constant 0 : index
    %40 = vector.load %arg6[%c0_34, %c0_35, %c0_36, %c0_37] : memref<2x2x16x16xf32, #tpu.memory_space<vmem>>, vector<2x2x16x16xf32>
    %41 = arith.subf %40, %0 : vector<2x2x16x16xf32>
    %42 = math.absf %41 : vector<2x2x16x16xf32>
    %cst_38 = arith.constant 1.000000e+00 : f32
    %43 = vector.broadcast %cst_38 : f32 to vector<2x2x16x16xf32>
    %44 = arith.mulf %43, %42 : vector<2x2x16x16xf32>
    %45 = arith.addf %39, %44 : vector<2x2x16x16xf32>
    %cst_39 = arith.constant 0.000000e+00 : f32
    %46 = vector.shape_cast %10 : vector<2x1x16x16xi1> to vector<2x1x16x16xi1>
    %47 = vector.broadcast %46 : vector<2x1x16x16xi1> to vector<2x2x16x16xi1>
    %48 = vector.broadcast %cst_39 : f32 to vector<2x2x16x16xf32>
    %49 = arith.select %47, %45, %48 : vector<2x2x16x16xi1>, vector<2x2x16x16xf32>
    %cst_40 = arith.constant dense<0.000000e+00> : vector<16x16xf32>
    %50 = vector.multi_reduction <add>, %49, %cst_40 [0, 1] : vector<2x2x16x16xf32> to vector<16x16xf32>
    %51 = vector.extract_strided_slice %50 {offsets = [0, 0], sizes = [8, 16], strides = [1, 1]} : vector<16x16xf32> to vector<8x16xf32>
    %52 = vector.extract_strided_slice %50 {offsets = [8, 0], sizes = [8, 16], strides = [1, 1]} : vector<16x16xf32> to vector<8x16xf32>
    %53 = arith.addf %51, %52 : vector<8x16xf32>
    %c0_41 = arith.constant 0 : index
    %c0_42 = arith.constant 0 : index
    %54 = vector.load %arg9[%c0_41, %c0_42] : memref<8x16xf32, #tpu.memory_space<vmem>>, vector<8x16xf32>
    tpu.vector_store %arg9[%c0_41, %c0_42], %53 {strides = array<i32>} : memref<8x16xf32, #tpu.memory_space<vmem>>, vector<8x16xf32>,
    return
  }
  func.func @transform_0(%arg0: i32) -> (i32, i32, i32, i32) {
    %c0_i32 = arith.constant 0 : i32
    %c0_i32_0 = arith.constant 0 : i32
    %c0_i32_1 = arith.constant 0 : i32
    %c0_i32_2 = arith.constant 0 : i32
    return %c0_i32, %c0_i32_0, %arg0, %c0_i32_1 : i32, i32, i32, i32
  }
  func.func @transform_1(%arg0: i32) -> (i32, i32, i32, i32) {
    %c0_i32 = arith.constant 0 : i32
    %c0_i32_0 = arith.constant 0 : i32
    %c0_i32_1 = arith.constant 0 : i32
    %c0_i32_2 = arith.constant 0 : i32
    return %c0_i32, %c0_i32_0, %arg0, %c0_i32_1 : i32, i32, i32, i32
  }
  func.func @transform_2(%arg0: i32) -> (i32, i32, i32, i32) {
    %c0_i32 = arith.constant 0 : i32
    %c0_i32_0 = arith.constant 0 : i32
    %c0_i32_1 = arith.constant 0 : i32
    %c0_i32_2 = arith.constant 0 : i32
    return %c0_i32, %c0_i32_0, %arg0, %c0_i32_1 : i32, i32, i32, i32
  }
  func.func @transform_3(%arg0: i32) -> (i32, i32, i32, i32) {
    %c0_i32 = arith.constant 0 : i32
    %c0_i32_0 = arith.constant 0 : i32
    %c0_i32_1 = arith.constant 0 : i32
    %c0_i32_2 = arith.constant 0 : i32
    return %c0_i32, %c0_i32_0, %arg0, %c0_i32_1 : i32, i32, i32, i32
  }
  func.func @transform_4(%arg0: i32) -> (i32, i32, i32, i32) {
    %c0_i32 = arith.constant 0 : i32
    %c0_i32_0 = arith.constant 0 : i32
    %c0_i32_1 = arith.constant 0 : i32
    %c0_i32_2 = arith.constant 0 : i32
    return %c0_i32, %c0_i32_0, %arg0, %c0_i32_1 : i32, i32, i32, i32
  }
  func.func @transform_5(%arg0: i32) -> (i32, i32, i32, i32) {
    %c0_i32 = arith.constant 0 : i32
    %c0_i32_0 = arith.constant 0 : i32
    %c0_i32_1 = arith.constant 0 : i32
    %c0_i32_2 = arith.constant 0 : i32
    return %c0_i32, %c0_i32_0, %arg0, %c0_i32_1 : i32, i32, i32, i32
  }
  func.func @transform_6(%arg0: i32) -> (i32, i32, i32, i32) {
    %c0_i32 = arith.constant 0 : i32
    %c0_i32_0 = arith.constant 0 : i32
    %c0_i32_1 = arith.constant 0 : i32
    %c0_i32_2 = arith.constant 0 : i32
    return %c0_i32, %c0_i32_0, %arg0, %c0_i32_1 : i32, i32, i32, i32
  }
  func.func @transform_7(%arg0: i32) -> (i32, i32, i32, i32) {
    %c0_i32 = arith.constant 0 : i32
    %c0_i32_0 = arith.constant 0 : i32
    %c0_i32_1 = arith.constant 0 : i32
    %c0_i32_2 = arith.constant 0 : i32
    return %c0_i32, %c0_i32_0, %arg0, %c0_i32_1 : i32, i32, i32, i32
  }
  func.func @transform_8(%arg0: i32) -> (i32, i32) {
    %c0_i32 = arith.constant 0 : i32
    %c0_i32_0 = arith.constant 0 : i32
    return %arg0, %c0_i32 : i32, i32
  }
}

</mosaic_0001>

<llo_original>
// kernel: tpu_custom_call.1
$region0: #{tpu_custom_call.1}
  #allocation0 [shape = 'u32[]', space=smem, size = 0x4, offset = 0x4, fixed_abs, tag = 'smem constant byte address 0x4 - core index']
  #allocation1 [shape = 'u32[144,128]{1,0:T(1,128)}', space=vmem, size = 0x12000, scoped, tag = 'internal scratch']
  %s0 = inlined_call_operand.hbm [shape: f32[2,2,16,16], index: 0, kind: input, shape index: {}]
  %s1 = inlined_call_operand.hbm [shape: f32[2,2,16,16], index: 1, kind: input, shape index: {}]
  %s2 = inlined_call_operand.hbm [shape: f32[2,2,16,16], index: 2, kind: input, shape index: {}]
  %s3 = inlined_call_operand.hbm [shape: f32[2,2,16,16], index: 3, kind: input, shape index: {}]
  %s4 = inlined_call_operand.hbm [shape: f32[2,2,16,16], index: 4, kind: input, shape index: {}]
  %s5 = inlined_call_operand.hbm [shape: f32[2,2,16,16], index: 5, kind: input, shape index: {}]
  %s6 = inlined_call_operand.hbm [shape: f32[2,2,16,16], index: 6, kind: input, shape index: {}]
  %s7 = inlined_call_operand.hbm [shape: f32[2,1,16,16], index: 7, kind: input, shape index: {}]
  %s8 = inlined_call_operand.hbm [shape: f32[8,16], index: 8, kind: output, shape index: {}]
  %s9 = sld [smem:[#allocation0]]
  $region74: #{tpu_custom_call.1} parent=0
    _
  %s11 = ssub.s32 1, %s9
  %s12 = scalar_select 0, %s11, %s9
  $region1: #{tpu_custom_call.1} parent=0
    #allocation2 [shape = 'u8[32768]{0}', space=vmem, size = 0x8000, scoped, tag = 'input window, operand 0, single buffered']
    #allocation3 [shape = 's32[1]{0}', space=sflag, size = 0x4, scoped, tag = 'scoped memory for tpu_custom_call.1']
    #allocation4 [shape = 's32[1]{0}', space=sflag, size = 0x4, scoped, tag = 'scoped memory for tpu_custom_call.1']
    #allocation5 [shape = 'u8[32768]{0}', space=vmem, size = 0x8000, scoped, tag = 'input window, operand 1, single buffered']
    #allocation6 [shape = 's32[1]{0}', space=sflag, size = 0x4, scoped, tag = 'scoped memory for tpu_custom_call.1']
    #allocation7 [shape = 'u8[32768]{0}', space=vmem, size = 0x8000, scoped, tag = 'input window, operand 2, single buffered']
    #allocation8 [shape = 'u8[32768]{0}', space=vmem, size = 0x8000, scoped, tag = 'input window, operand 3, single buffered']
    #allocation9 [shape = 's32[1]{0}', space=sflag, size = 0x4, scoped, tag = 'scoped memory for tpu_custom_call.1']
    #allocation10 [shape = 'u8[32768]{0}', space=vmem, size = 0x8000, scoped, tag = 'input window, operand 4, single buffered']
    #allocation11 [shape = 'u8[32768]{0}', space=vmem, size = 0x8000, scoped, tag = 'input window, operand 5, single buffered']
    #allocation12 [shape = 's32[1]{0}', space=sflag, size = 0x4, scoped, tag = 'scoped memory for tpu_custom_call.1']
    #allocation13 [shape = 'u8[32768]{0}', space=vmem, size = 0x8000, scoped, tag = 'input window, operand 6, single buffered']
    #allocation14 [shape = 'u8[16384]{0}', space=vmem, size = 0x4000, scoped, tag = 'input window, operand 7, single buffered']
    #allocation15 [shape = 's32[1]{0}', space=sflag, size = 0x4, scoped, tag = 'scoped memory for tpu_custom_call.1']
    #allocation16 [shape = 'u8[4096]{0}', space=vmem, size = 0x1000, scoped, tag = 'output window, operand 0, single buffered']
    %13 = vsyncpa [#allocation3], 0
    %14 = vsyncpa [#allocation6], 0
    %15 = vsyncpa [#allocation9], 0
    %16 = vsyncpa [#allocation12], 0
    %17 = vsyncpa [#allocation15], 0
    %18 = vsyncpa [#allocation4], 0
    // Predicated region
    $region2: #{tpu_custom_call.1} parent=1 // pred_check
      _
    $region3: #{tpu_custom_call.1} parent=1 // pred_check_branch
      %20 = sbr.rel (0) target = $region5
    $region4: #{tpu_custom_call.1} parent=1 // pred_region
      %s22 = ssub.s32 1024, 1024
      %23 = vsyncadd [#allocation3], %s22
      %s24 = sshll.u32 [#allocation2], 4
      %s25 = int_to_ptr.vmem [resolvable:$true] %s24
      %30 = dma.hbm_to_vmem [thread:$0]  %s0, 1024, %s25, [#allocation3], 128, 128, 8
    $region5: #{tpu_custom_call.1} parent=1 // pred_fallthru
      _
    // Predicated region
    $region6: #{tpu_custom_call.1} parent=1 // pred_check
      _
    $region7: #{tpu_custom_call.1} parent=1 // pred_check_branch
      %32 = sbr.rel (0) target = $region9
    $region8: #{tpu_custom_call.1} parent=1 // pred_region
      %s34 = ssub.s32 1024, 1024
      %35 = vsyncadd [#allocation6], %s34
      %s36 = sshll.u32 [#allocation5], 4
      %s37 = int_to_ptr.vmem [resolvable:$true] %s36
      %42 = dma.hbm_to_vmem [thread:$0]  %s1, 1024, %s37, [#allocation6], 128, 128, 8
    $region9: #{tpu_custom_call.1} parent=1 // pred_fallthru
      _
    // Predicated region
    $region10: #{tpu_custom_call.1} parent=1 // pred_check
      _
    $region11: #{tpu_custom_call.1} parent=1 // pred_check_branch
      %44 = sbr.rel (0) target = $region13
    $region12: #{tpu_custom_call.1} parent=1 // pred_region
      %s46 = ssub.s32 1024, 1024
      %47 = vsyncadd [#allocation6], %s46
      %s48 = sshll.u32 [#allocation7], 4
      %s49 = int_to_ptr.vmem [resolvable:$true] %s48
      %54 = dma.hbm_to_vmem [thread:$0]  %s2, 1024, %s49, [#allocation6], 128, 128, 8
    $region13: #{tpu_custom_call.1} parent=1 // pred_fallthru
      _
    // Predicated region
    $region14: #{tpu_custom_call.1} parent=1 // pred_check
      _
    $region15: #{tpu_custom_call.1} parent=1 // pred_check_branch
      %56 = sbr.rel (0) target = $region17
    $region16: #{tpu_custom_call.1} parent=1 // pred_region
      %s58 = ssub.s32 1024, 1024
      %59 = vsyncadd [#allocation9], %s58
      %s60 = sshll.u32 [#allocation8], 4
      %s61 = int_to_ptr.vmem [resolvable:$true] %s60
      %66 = dma.hbm_to_vmem [thread:$0]  %s3, 1024, %s61, [#allocation9], 128, 128, 8
    $region17: #{tpu_custom_call.1} parent=1 // pred_fallthru
      _
    // Predicated region
    $region18: #{tpu_custom_call.1} parent=1 // pred_check
      _
    $region19: #{tpu_custom_call.1} parent=1 // pred_check_branch
      %68 = sbr.rel (0) target = $region21
    $region20: #{tpu_custom_call.1} parent=1 // pred_region
      %s70 = ssub.s32 1024, 1024
      %71 = vsyncadd [#allocation9], %s70
      %s72 = sshll.u32 [#allocation10], 4
      %s73 = int_to_ptr.vmem [resolvable:$true] %s72
      %78 = dma.hbm_to_vmem [thread:$0]  %s4, 1024, %s73, [#allocation9], 128, 128, 8
    $region21: #{tpu_custom_call.1} parent=1 // pred_fallthru
      _
    // Predicated region
    $region22: #{tpu_custom_call.1} parent=1 // pred_check
      _
    $region23: #{tpu_custom_call.1} parent=1 // pred_check_branch
      %80 = sbr.rel (0) target = $region25
    $region24: #{tpu_custom_call.1} parent=1 // pred_region
      %s82 = ssub.s32 1024, 1024
      %83 = vsyncadd [#allocation12], %s82
      %s84 = sshll.u32 [#allocation11], 4
      %s85 = int_to_ptr.vmem [resolvable:$true] %s84
      %90 = dma.hbm_to_vmem [thread:$0]  %s5, 1024, %s85, [#allocation12], 128, 128, 8
    $region25: #{tpu_custom_call.1} parent=1 // pred_fallthru
      _
    // Predicated region
    $region26: #{tpu_custom_call.1} parent=1 // pred_check
      _
    $region27: #{tpu_custom_call.1} parent=1 // pred_check_branch
      %92 = sbr.rel (0) target = $region29
    $region28: #{tpu_custom_call.1} parent=1 // pred_region
      %s94 = ssub.s32 1024, 1024
      %95 = vsyncadd [#allocation12], %s94
      %s96 = sshll.u32 [#allocation13], 4
      %s97 = int_to_ptr.vmem [resolvable:$true] %s96
      %102 = dma.hbm_to_vmem [thread:$0]  %s6, 1024, %s97, [#allocation12], 128, 128, 8
    $region29: #{tpu_custom_call.1} parent=1 // pred_fallthru
      _
    // Predicated region
    $region30: #{tpu_custom_call.1} parent=1 // pred_check
      _
    $region31: #{tpu_custom_call.1} parent=1 // pred_check_branch
      %104 = sbr.rel (0) target = $region33
    $region32: #{tpu_custom_call.1} parent=1 // pred_region
      %s106 = ssub.s32 512, 512
      %107 = vsyncadd [#allocation15], %s106
      %s108 = sshll.u32 [#allocation14], 4
      %s109 = int_to_ptr.vmem [resolvable:$true] %s108
      %114 = dma.hbm_to_vmem [thread:$0]  %s7, 512, %s109, [#allocation15], 128, 128, 8
    $region33: #{tpu_custom_call.1} parent=1 // pred_fallthru
      _
    // Predicated region
    $region34: #{tpu_custom_call.1} parent=1 // pred_check
      _
    $region35: #{tpu_custom_call.1} parent=1 // pred_check_branch
      %116 = sbr.rel (0) target = $region37
    $region36: #{tpu_custom_call.1} parent=1 // pred_region
      %117 = dma.done [#allocation3], 1024
    $region37: #{tpu_custom_call.1} parent=1 // pred_fallthru
      _
    // Predicated region
    $region38: #{tpu_custom_call.1} parent=1 // pred_check
      _
    $region39: #{tpu_custom_call.1} parent=1 // pred_check_branch
      %119 = sbr.rel (0) target = $region41
    $region40: #{tpu_custom_call.1} parent=1 // pred_region
      %120 = dma.done [#allocation6], 1024
    $region41: #{tpu_custom_call.1} parent=1 // pred_fallthru
      _
    // Predicated region
    $region42: #{tpu_custom_call.1} parent=1 // pred_check
      _
    $region43: #{tpu_custom_call.1} parent=1 // pred_check_branch
      %122 = sbr.rel (0) target = $region45
    $region44: #{tpu_custom_call.1} parent=1 // pred_region
      %123 = dma.done [#allocation6], 1024
    $region45: #{tpu_custom_call.1} parent=1 // pred_fallthru
      _
    // Predicated region
    $region46: #{tpu_custom_call.1} parent=1 // pred_check
      _
    $region47: #{tpu_custom_call.1} parent=1 // pred_check_branch
      %125 = sbr.rel (0) target = $region49
    $region48: #{tpu_custom_call.1} parent=1 // pred_region
      %126 = dma.done [#allocation9], 1024
    $region49: #{tpu_custom_call.1} parent=1 // pred_fallthru
      _
    // Predicated region
    $region50: #{tpu_custom_call.1} parent=1 // pred_check
      _
    $region51: #{tpu_custom_call.1} parent=1 // pred_check_branch
      %128 = sbr.rel (0) target = $region53
    $region52: #{tpu_custom_call.1} parent=1 // pred_region
      %129 = dma.done [#allocation9], 1024
    $region53: #{tpu_custom_call.1} parent=1 // pred_fallthru
      _
    // Predicated region
    $region54: #{tpu_custom_call.1} parent=1 // pred_check
      _
    $region55: #{tpu_custom_call.1} parent=1 // pred_check_branch
      %131 = sbr.rel (0) target = $region57
    $region56: #{tpu_custom_call.1} parent=1 // pred_region
      %132 = dma.done [#allocation12], 1024
    $region57: #{tpu_custom_call.1} parent=1 // pred_fallthru
      _
    // Predicated region
    $region58: #{tpu_custom_call.1} parent=1 // pred_check
      _
    $region59: #{tpu_custom_call.1} parent=1 // pred_check_branch
      %134 = sbr.rel (0) target = $region61
    $region60: #{tpu_custom_call.1} parent=1 // pred_region
      %135 = dma.done [#allocation12], 1024
    $region61: #{tpu_custom_call.1} parent=1 // pred_fallthru
      _
    // Predicated region
    $region62: #{tpu_custom_call.1} parent=1 // pred_check
      _
    $region63: #{tpu_custom_call.1} parent=1 // pred_check_branch
      %137 = sbr.rel (0) target = $region65
    $region64: #{tpu_custom_call.1} parent=1 // pred_region
      %138 = dma.done [#allocation15], 512
    $region65: #{tpu_custom_call.1} parent=1 // pred_fallthru
      _
    %v139 = vld [vmem:[#allocation13] sm:$0xff]
    %v140 = vld [vmem:[#allocation13 + $0x8] sm:$0xff]
    %v141 = vld [vmem:[#allocation13 + $0x10] sm:$0xff]
    %v142 = vld [vmem:[#allocation13 + $0x18] sm:$0xff]
    %v143 = vld [vmem:[#allocation13 + $0x20] sm:$0xff]
    %v144 = vld [vmem:[#allocation13 + $0x28] sm:$0xff]
    %v145 = vld [vmem:[#allocation13 + $0x30] sm:$0xff]
    %v146 = vld [vmem:[#allocation13 + $0x38] sm:$0xff]
    %v147 = vmul.f32 %v139, %v139
    %v148 = vmul.f32 %v140, %v140
    %v149 = vmul.f32 %v141, %v141
    %v150 = vmul.f32 %v142, %v142
    %v151 = vmul.f32 %v143, %v143
    %v152 = vmul.f32 %v144, %v144
    %v153 = vmul.f32 %v145, %v145
    %v154 = vmul.f32 %v146, %v146
    %vm155 = vcmask 130048
    %v156 = vsel %vm155, %v147, 0.0
    %v157 = vsel %vm155, %v149, 0.0
    %v158 = vadd.f32 %v156, %v157
    %v159 = vsel %vm155, %v148, 0.0
    %v160 = vsel %vm155, %v150, 0.0
    %v161 = vadd.f32 %v159, %v160
    %v162 = vsel %vm155, %v151, 0.0
    %v163 = vsel %vm155, %v153, 0.0
    %v164 = vadd.f32 %v162, %v163
    %v165 = vsel %vm155, %v152, 0.0
    %v166 = vsel %vm155, %v154, 0.0
    %v167 = vadd.f32 %v165, %v166
    %v168 = vrsqrt.pop %v158
    %v169 = vmul.f32 %v158, %v168
    %vm170 = vcmp.eq.f32.partialorder %v158, inf
    %v171 = vsel %vm170, %v158, %v169
    %vm172 = vcmp.eq.f32.partialorder %v158, 0.0
    %v173 = vand.u32 %v158, 2147483648
    %v174 = vsel %vm172, %v173, %v171
    %v175 = vrsqrt.pop %v161
    %v176 = vmul.f32 %v161, %v175
    %vm177 = vcmp.eq.f32.partialorder %v161, inf
    %v178 = vsel %vm177, %v161, %v176
    %vm179 = vcmp.eq.f32.partialorder %v161, 0.0
    %v180 = vand.u32 %v161, 2147483648
    %v181 = vsel %vm179, %v180, %v178
    %v182 = vrsqrt.pop %v164
    %v183 = vmul.f32 %v164, %v182
    %vm184 = vcmp.eq.f32.partialorder %v164, inf
    %v185 = vsel %vm184, %v164, %v183
    %vm186 = vcmp.eq.f32.partialorder %v164, 0.0
    %v187 = vand.u32 %v164, 2147483648
    %v188 = vsel %vm186, %v187, %v185
    %v189 = vrsqrt.pop %v167
    %v190 = vmul.f32 %v167, %v189
    %vm191 = vcmp.eq.f32.partialorder %v167, inf
    %v192 = vsel %vm191, %v167, %v190
    %vm193 = vcmp.eq.f32.partialorder %v167, 0.0
    %v194 = vand.u32 %v167, 2147483648
    %v195 = vsel %vm193, %v194, %v192
    %v196 = vld [vmem:[#allocation14] sm:$0xff]
    %v197 = vld [vmem:[#allocation14 + $0x8] sm:$0xff]
    %v198 = vld [vmem:[#allocation14 + $0x10] sm:$0xff]
    %v199 = vld [vmem:[#allocation14 + $0x18] sm:$0xff]
    %vm200 = vcmp.ge.f32.partialorder %v196, 0.5
    %vm201 = vcmp.ge.f32.partialorder %v197, 0.5
    %vm202 = vcmp.ge.f32.partialorder %v198, 0.5
    %vm203 = vcmp.ge.f32.partialorder %v199, 0.5
    %vm204 = vcmp.lt.f32.partialorder %v174, 400.0
    %vm205 = vcmp.lt.f32.partialorder %v181, 400.0
    %vm206 = vcmp.lt.f32.partialorder %v188, 400.0
    %vm207 = vcmp.lt.f32.partialorder %v195, 400.0
    %vm208 = vmand %vm200, %vm204
    %vm209 = vmand %vm201, %vm205
    %vm210 = vmand %vm202, %vm206
    %vm211 = vmand %vm203, %vm207
    %v212 = vld [vmem:[#allocation2] sm:$0xff]
    %v213 = vld [vmem:[#allocation2 + $0x8] sm:$0xff]
    %v214 = vld [vmem:[#allocation2 + $0x10] sm:$0xff]
    %v215 = vld [vmem:[#allocation2 + $0x18] sm:$0xff]
    %v216 = vld [vmem:[#allocation2 + $0x20] sm:$0xff]
    %v217 = vld [vmem:[#allocation2 + $0x28] sm:$0xff]
    %v218 = vld [vmem:[#allocation2 + $0x30] sm:$0xff]
    %v219 = vld [vmem:[#allocation2 + $0x38] sm:$0xff]
    %v220 = vsub.f32 %v212, %v139
    %v221 = vsub.f32 %v213, %v140
    %v222 = vsub.f32 %v214, %v141
    %v223 = vsub.f32 %v215, %v142
    %v224 = vsub.f32 %v216, %v143
    %v225 = vsub.f32 %v217, %v144
    %v226 = vsub.f32 %v218, %v145
    %v227 = vsub.f32 %v219, %v146
    %v228 = vand.u32 2147483647, %v220
    %v229 = vand.u32 2147483647, %v221
    %v230 = vand.u32 2147483647, %v222
    %v231 = vand.u32 2147483647, %v223
    %v232 = vand.u32 2147483647, %v224
    %v233 = vand.u32 2147483647, %v225
    %v234 = vand.u32 2147483647, %v226
    %v235 = vand.u32 2147483647, %v227
    %v236 = vmul.f32 %v228, 0.32768
    %v237 = vmul.f32 %v229, 0.32768
    %v238 = vmul.f32 %v230, 0.32768
    %v239 = vmul.f32 %v231, 0.32768
    %v240 = vmul.f32 %v232, 0.32768
    %v241 = vmul.f32 %v233, 0.32768
    %v242 = vmul.f32 %v234, 0.32768
    %v243 = vmul.f32 %v235, 0.32768
    %v244 = vld [vmem:[#allocation5] sm:$0xff]
    %v245 = vld [vmem:[#allocation5 + $0x8] sm:$0xff]
    %v246 = vld [vmem:[#allocation5 + $0x10] sm:$0xff]
    %v247 = vld [vmem:[#allocation5 + $0x18] sm:$0xff]
    %v248 = vld [vmem:[#allocation5 + $0x20] sm:$0xff]
    %v249 = vld [vmem:[#allocation5 + $0x28] sm:$0xff]
    %v250 = vld [vmem:[#allocation5 + $0x30] sm:$0xff]
    %v251 = vld [vmem:[#allocation5 + $0x38] sm:$0xff]
    %v252 = vsub.f32 %v244, %v139
    %v253 = vsub.f32 %v245, %v140
    %v254 = vsub.f32 %v246, %v141
    %v255 = vsub.f32 %v247, %v142
    %v256 = vsub.f32 %v248, %v143
    %v257 = vsub.f32 %v249, %v144
    %v258 = vsub.f32 %v250, %v145
    %v259 = vsub.f32 %v251, %v146
    %v260 = vand.u32 2147483647, %v252
    %v261 = vand.u32 2147483647, %v253
    %v262 = vand.u32 2147483647, %v254
    %v263 = vand.u32 2147483647, %v255
    %v264 = vand.u32 2147483647, %v256
    %v265 = vand.u32 2147483647, %v257
    %v266 = vand.u32 2147483647, %v258
    %v267 = vand.u32 2147483647, %v259
    %v268 = vmul.f32 %v260, 0.4096
    %v269 = vmul.f32 %v261, 0.4096
    %v270 = vmul.f32 %v262, 0.4096
    %v271 = vmul.f32 %v263, 0.4096
    %v272 = vmul.f32 %v264, 0.4096
    %v273 = vmul.f32 %v265, 0.4096
    %v274 = vmul.f32 %v266, 0.4096
    %v275 = vmul.f32 %v267, 0.4096
    %v276 = vadd.f32 %v236, %v268
    %v277 = vadd.f32 %v237, %v269
    %v278 = vadd.f32 %v238, %v270
    %v279 = vadd.f32 %v239, %v271
    %v280 = vadd.f32 %v240, %v272
    %v281 = vadd.f32 %v241, %v273
    %v282 = vadd.f32 %v242, %v274
    %v283 = vadd.f32 %v243, %v275
    %v284 = vld [vmem:[#allocation7] sm:$0xff]
    %v285 = vld [vmem:[#allocation7 + $0x8] sm:$0xff]
    %v286 = vld [vmem:[#allocation7 + $0x10] sm:$0xff]
    %v287 = vld [vmem:[#allocation7 + $0x18] sm:$0xff]
    %v288 = vld [vmem:[#allocation7 + $0x20] sm:$0xff]
    %v289 = vld [vmem:[#allocation7 + $0x28] sm:$0xff]
    %v290 = vld [vmem:[#allocation7 + $0x30] sm:$0xff]
    %v291 = vld [vmem:[#allocation7 + $0x38] sm:$0xff]
    %v292 = vsub.f32 %v284, %v139
    %v293 = vsub.f32 %v285, %v140
    %v294 = vsub.f32 %v286, %v141
    %v295 = vsub.f32 %v287, %v142
    %v296 = vsub.f32 %v288, %v143
    %v297 = vsub.f32 %v289, %v144
    %v298 = vsub.f32 %v290, %v145
    %v299 = vsub.f32 %v291, %v146
    %v300 = vand.u32 2147483647, %v292
    %v301 = vand.u32 2147483647, %v293
    %v302 = vand.u32 2147483647, %v294
    %v303 = vand.u32 2147483647, %v295
    %v304 = vand.u32 2147483647, %v296
    %v305 = vand.u32 2147483647, %v297
    %v306 = vand.u32 2147483647, %v298
    %v307 = vand.u32 2147483647, %v299
    %v308 = vmul.f32 %v300, 0.512
    %v309 = vmul.f32 %v301, 0.512
    %v310 = vmul.f32 %v302, 0.512
    %v311 = vmul.f32 %v303, 0.512
    %v312 = vmul.f32 %v304, 0.512
    %v313 = vmul.f32 %v305, 0.512
    %v314 = vmul.f32 %v306, 0.512
    %v315 = vmul.f32 %v307, 0.512
    %v316 = vadd.f32 %v276, %v308
    %v317 = vadd.f32 %v277, %v309
    %v318 = vadd.f32 %v278, %v310
    %v319 = vadd.f32 %v279, %v311
    %v320 = vadd.f32 %v280, %v312
    %v321 = vadd.f32 %v281, %v313
    %v322 = vadd.f32 %v282, %v314
    %v323 = vadd.f32 %v283, %v315
    %v324 = vld [vmem:[#allocation8] sm:$0xff]
    %v325 = vld [vmem:[#allocation8 + $0x8] sm:$0xff]
    %v326 = vld [vmem:[#allocation8 + $0x10] sm:$0xff]
    %v327 = vld [vmem:[#allocation8 + $0x18] sm:$0xff]
    %v328 = vld [vmem:[#allocation8 + $0x20] sm:$0xff]
    %v329 = vld [vmem:[#allocation8 + $0x28] sm:$0xff]
    %v330 = vld [vmem:[#allocation8 + $0x30] sm:$0xff]
    %v331 = vld [vmem:[#allocation8 + $0x38] sm:$0xff]
    %v332 = vsub.f32 %v324, %v139
    %v333 = vsub.f32 %v325, %v140
    %v334 = vsub.f32 %v326, %v141
    %v335 = vsub.f32 %v327, %v142
    %v336 = vsub.f32 %v328, %v143
    %v337 = vsub.f32 %v329, %v144
    %v338 = vsub.f32 %v330, %v145
    %v339 = vsub.f32 %v331, %v146
    %v340 = vand.u32 2147483647, %v332
    %v341 = vand.u32 2147483647, %v333
    %v342 = vand.u32 2147483647, %v334
    %v343 = vand.u32 2147483647, %v335
    %v344 = vand.u32 2147483647, %v336
    %v345 = vand.u32 2147483647, %v337
    %v346 = vand.u32 2147483647, %v338
    %v347 = vand.u32 2147483647, %v339
    %v348 = vmul.f32 %v340, 0.64
    %v349 = vmul.f32 %v341, 0.64
    %v350 = vmul.f32 %v342, 0.64
    %v351 = vmul.f32 %v343, 0.64
    %v352 = vmul.f32 %v344, 0.64
    %v353 = vmul.f32 %v345, 0.64
    %v354 = vmul.f32 %v346, 0.64
    %v355 = vmul.f32 %v347, 0.64
    %v356 = vadd.f32 %v316, %v348
    %v357 = vadd.f32 %v317, %v349
    %v358 = vadd.f32 %v318, %v350
    %v359 = vadd.f32 %v319, %v351
    %v360 = vadd.f32 %v320, %v352
    %v361 = vadd.f32 %v321, %v353
    %v362 = vadd.f32 %v322, %v354
    %v363 = vadd.f32 %v323, %v355
    %v364 = vld [vmem:[#allocation10] sm:$0xff]
    %v365 = vld [vmem:[#allocation10 + $0x8] sm:$0xff]
    %v366 = vld [vmem:[#allocation10 + $0x10] sm:$0xff]
    %v367 = vld [vmem:[#allocation10 + $0x18] sm:$0xff]
    %v368 = vld [vmem:[#allocation10 + $0x20] sm:$0xff]
    %v369 = vld [vmem:[#allocation10 + $0x28] sm:$0xff]
    %v370 = vld [vmem:[#allocation10 + $0x30] sm:$0xff]
    %v371 = vld [vmem:[#allocation10 + $0x38] sm:$0xff]
    %v372 = vsub.f32 %v364, %v139
    %v373 = vsub.f32 %v365, %v140
    %v374 = vsub.f32 %v366, %v141
    %v375 = vsub.f32 %v367, %v142
    %v376 = vsub.f32 %v368, %v143
    %v377 = vsub.f32 %v369, %v144
    %v378 = vsub.f32 %v370, %v145
    %v379 = vsub.f32 %v371, %v146
    %v380 = vand.u32 2147483647, %v372
    %v381 = vand.u32 2147483647, %v373
    %v382 = vand.u32 2147483647, %v374
    %v383 = vand.u32 2147483647, %v375
    %v384 = vand.u32 2147483647, %v376
    %v385 = vand.u32 2147483647, %v377
    %v386 = vand.u32 2147483647, %v378
    %v387 = vand.u32 2147483647, %v379
    %v388 = vmul.f32 %v380, 0.8
    %v389 = vmul.f32 %v381, 0.8
    %v390 = vmul.f32 %v382, 0.8
    %v391 = vmul.f32 %v383, 0.8
    %v392 = vmul.f32 %v384, 0.8
    %v393 = vmul.f32 %v385, 0.8
    %v394 = vmul.f32 %v386, 0.8
    %v395 = vmul.f32 %v387, 0.8
    %v396 = vadd.f32 %v356, %v388
    %v397 = vadd.f32 %v357, %v389
    %v398 = vadd.f32 %v358, %v390
    %v399 = vadd.f32 %v359, %v391
    %v400 = vadd.f32 %v360, %v392
    %v401 = vadd.f32 %v361, %v393
    %v402 = vadd.f32 %v362, %v394
    %v403 = vadd.f32 %v363, %v395
    %v404 = vld [vmem:[#allocation11] sm:$0xff]
    %v405 = vld [vmem:[#allocation11 + $0x8] sm:$0xff]
    %v406 = vld [vmem:[#allocation11 + $0x10] sm:$0xff]
    %v407 = vld [vmem:[#allocation11 + $0x18] sm:$0xff]
    %v408 = vld [vmem:[#allocation11 + $0x20] sm:$0xff]
    %v409 = vld [vmem:[#allocation11 + $0x28] sm:$0xff]
    %v410 = vld [vmem:[#allocation11 + $0x30] sm:$0xff]
    %v411 = vld [vmem:[#allocation11 + $0x38] sm:$0xff]
    %v412 = vsub.f32 %v404, %v139
    %v413 = vsub.f32 %v405, %v140
    %v414 = vsub.f32 %v406, %v141
    %v415 = vsub.f32 %v407, %v142
    %v416 = vsub.f32 %v408, %v143
    %v417 = vsub.f32 %v409, %v144
    %v418 = vsub.f32 %v410, %v145
    %v419 = vsub.f32 %v411, %v146
    %v420 = vand.u32 2147483647, %v412
    %v421 = vand.u32 2147483647, %v413
    %v422 = vand.u32 2147483647, %v414
    %v423 = vand.u32 2147483647, %v415
    %v424 = vand.u32 2147483647, %v416
    %v425 = vand.u32 2147483647, %v417
    %v426 = vand.u32 2147483647, %v418
    %v427 = vand.u32 2147483647, %v419
    %v428 = vadd.f32 %v396, %v420
    %v429 = vadd.f32 %v397, %v421
    %v430 = vadd.f32 %v398, %v422
    %v431 = vadd.f32 %v399, %v423
    %v432 = vadd.f32 %v400, %v424
    %v433 = vadd.f32 %v401, %v425
    %v434 = vadd.f32 %v402, %v426
    %v435 = vadd.f32 %v403, %v427
    %v436 = vsel %vm208, 1, 0
    %v437 = vsel %vm209, 1, 0
    %v438 = vsel %vm210, 1, 0
    %v439 = vsel %vm211, 1, 0
    %vm440 = vcmp.eq.s32.totalorder %v436, 1
    %vm441 = vcmp.eq.s32.totalorder %v437, 1
    %vm442 = vcmp.eq.s32.totalorder %v438, 1
    %vm443 = vcmp.eq.s32.totalorder %v439, 1
    %v444 = vsel %vm440, %v428, 0.0
    %v445 = vsel %vm441, %v429, 0.0
    %v446 = vsel %vm440, %v430, 0.0
    %v447 = vsel %vm441, %v431, 0.0
    %v448 = vsel %vm442, %v432, 0.0
    %v449 = vsel %vm443, %v433, 0.0
    %v450 = vsel %vm442, %v434, 0.0
    %v451 = vsel %vm443, %v435, 0.0
    %v452 = vsel %vm155, %v444, 0.0
    %v453 = vsel %vm155, %v446, 0.0
    %v454 = vadd.f32 %v452, %v453
    %v455 = vsel %vm155, %v448, 0.0
    %v456 = vadd.f32 %v454, %v455
    %v457 = vsel %vm155, %v450, 0.0
    %v458 = vadd.f32 %v456, %v457
    %v459 = vsel %vm155, %v445, 0.0
    %v460 = vsel %vm155, %v447, 0.0
    %v461 = vadd.f32 %v459, %v460
    %v462 = vsel %vm155, %v449, 0.0
    %v463 = vadd.f32 %v461, %v462
    %v464 = vsel %vm155, %v451, 0.0
    %v465 = vadd.f32 %v463, %v464
    %v466 = vadd.f32 %v458, %v465
    %467 = vst.msk [vmem:[#allocation16] sm:$0xff] %vm155, %v466
    // Predicated region
    $region66: #{tpu_custom_call.1} parent=1 // pred_check
      _
    $region67: #{tpu_custom_call.1} parent=1 // pred_check_branch
      %469 = sbr.rel (0) target = $region69
    $region68: #{tpu_custom_call.1} parent=1 // pred_region
      %s471 = ssub.s32 128, 128
      %472 = vsyncadd [#allocation4], %s471
      %s474 = sshll.u32 [#allocation16], 4
      %s475 = int_to_ptr.vmem [resolvable:$true] %s474
      %477 = dma.vmem_to_hbm [thread:$0]  %s475, 128, %s8, [#allocation4]
    $region69: #{tpu_custom_call.1} parent=1 // pred_fallthru
      _
    // Predicated region
    $region70: #{tpu_custom_call.1} parent=1 // pred_check
      _
    $region71: #{tpu_custom_call.1} parent=1 // pred_check_branch
      %479 = sbr.rel (0) target = $region73
    $region72: #{tpu_custom_call.1} parent=1 // pred_region
      %480 = dma.done [#allocation4], 128
    $region73: #{tpu_custom_call.1} parent=1 // pred_fallthru
      _
    %481 = vsyncpa [#allocation3], 1
    %482 = vsyncpa [#allocation6], 1
    %483 = vsyncpa [#allocation9], 1
    %484 = vsyncpa [#allocation12], 1
    %485 = vsyncpa [#allocation15], 1
    %486 = vsyncpa [#allocation4], 1

</llo_original>
